<compile_context>
chip_gen: v7x
topology: tpu7x:2x2x1
jax: 0.10.0
libtpu: 0.0.40
codegen_flags: <defaults>
</compile_context>

<pallas_src>
import jax
import jax.numpy as jnp
from jax.experimental import pallas as pl
from jax.experimental.pallas import tpu as pltpu


def ensemble_avg_kernel(x_ref, w_ref, b_ref, o_ref):
    """Single fused step for one (B-tile, D_out-tile):
       out = (x @ sum_m W_m + sum_m b_m) / M   (average is linear in Linear models).

    x_ref: (TB, D_in)    bf16
    w_ref: (M, D_in, TN) bf16   -- all M sub-model weight tiles in one block
    b_ref: (M, 1,  TN)   f32
    o_ref: (TB, TN)      f32
    """
    m = w_ref.shape[0]              # static
    inv_m = 1.0 / m

    # Sum the stacked weights / biases in f32 (cheap VPU adds over the leading
    # model axis), then do ONE bf16 MXU matmul with f32 accumulation.
    w_sum = jnp.sum(w_ref[...].astype(jnp.float32), axis=0)       # (D_in, TN)
    b_sum = jnp.sum(b_ref[...], axis=0)                           # (1, TN)

    y = jnp.dot(x_ref[...], w_sum.astype(jnp.bfloat16),
                preferred_element_type=jnp.float32)               # (TB, TN)
    o_ref[...] = ((y + b_sum) * inv_m).astype(o_ref.dtype)


def ensemble_average(x, weights, biases, *, tb=None, tn=None):
    """x: (B, D_in) f32; weights: (M, D_in, D_out) f32; biases: (M, D_out) f32.

    Returns mean_m(x @ W_m + b_m) with shape (B, D_out), dtype of x.
    Streams x / W as bf16 (HBM-bound regime), accumulates in f32.
    """
    B, D_in = x.shape
    M, _, D_out = weights.shape

    # Tile sizes: full extent at small sizes (single grid step), otherwise
    # chunks that keep the output lane-dense (multiple of 128) and comfortably
    # fit double-buffered in VMEM on v5e/v6e/v7x.
    if tb is None:
        tb = B if B <= 256 else 256
    if tn is None:
        tn = D_out if D_out <= 512 else 512

    x16 = x.astype(jnp.bfloat16)
    w16 = weights.astype(jnp.bfloat16)
    b3 = biases.reshape(M, 1, D_out).astype(jnp.float32)

    grid = (pl.cdiv(B, tb), pl.cdiv(D_out, tn))

    return pl.pallas_call(
        ensemble_avg_kernel,
        out_shape=jax.ShapeDtypeStruct((B, D_out), x.dtype),
        grid_spec=pltpu.PrefetchScalarGridSpec(
            num_scalar_prefetch=0,
            grid=grid,
            in_specs=[
                pl.BlockSpec((tb, D_in), lambda i, j: (i, 0)),        # x B-tile
                pl.BlockSpec((M, D_in, tn), lambda i, j: (0, 0, j)),  # all M W tiles
                pl.BlockSpec((M, 1, tn), lambda i, j: (0, 0, j)),     # all M biases
            ],
            out_specs=pl.BlockSpec((tb, tn), lambda i, j: (i, j)),
        ),
        compiler_params=pltpu.CompilerParams(
            dimension_semantics=("parallel", "parallel"),
            vmem_limit_bytes=32 * 1024 * 1024,
        ),
    )(x16, w16, b3)


if __name__ == "__main__":
    # Small, deterministic setup: 3 sub-models, batch=8, hidden 32 -> 128.
    M, B, D_in, D_out = 3, 8, 32, 128
    key = jax.random.PRNGKey(0)
    kx, kw, kb = jax.random.split(key, 3)

    x = jax.random.normal(kx, (B, D_in), dtype=jnp.float32)
    weights = jax.random.normal(kw, (M, D_in, D_out), dtype=jnp.float32) * 0.05
    biases = jax.random.normal(kb, (M, D_out), dtype=jnp.float32) * 0.1

    out = jax.block_until_ready(ensemble_average(x, weights, biases))

    # Pure-JAX reference follows the module exactly (per-model output, then
    # average), using the same bf16-cast operands the kernel streams.  The
    # only kernel-vs-reference difference is the bf16 rounding of the summed
    # weights, hence the slightly relaxed tolerance.
    x16 = x.astype(jnp.bfloat16)
    w16 = weights.astype(jnp.bfloat16)
    per_model = (
        jnp.einsum("bd,mde->mbe", x16, w16, preferred_element_type=jnp.float32)
        + biases[:, None, :]
    )
    ref = jnp.mean(per_model, axis=0)

    assert out.shape == (B, D_out)
    assert out.dtype == x.dtype
    err = float(jnp.max(jnp.abs(out - ref)))
    assert jnp.allclose(out, ref, atol=2e-2, rtol=2e-2), err

    print("KERNEL_OK")
</pallas_src>

<mosaic_0001>
module attributes {stable_mosaic.version = 11 : i64} {
  func.func @ensemble_avg_kernel(%arg0: i32, %arg1: i32, %arg2: memref<8x32xbf16, #tpu.memory_space<vmem>>, %arg3: memref<3x32x128xbf16, #tpu.memory_space<vmem>>, %arg4: memref<3x1x128xf32, #tpu.memory_space<vmem>>, %arg5: memref<8x128xf32, #tpu.memory_space<vmem>>) attributes {dimension_semantics = [#tpu.dimension_semantics<parallel>, #tpu.dimension_semantics<parallel>], iteration_bounds = array<i64: 1, 1>, scalar_prefetch = 0 : i64, scratch_operands = 0 : i64, tpu.core_type = #tpu.core_type<tc>, window_params = [{transform_indices = @transform_0, window_bounds = array<i64: 8, 32>}, {transform_indices = @transform_1, window_bounds = array<i64: 3, 32, 128>}, {transform_indices = @transform_2, window_bounds = array<i64: 3, 1, 128>}, {transform_indices = @transform_3, window_bounds = array<i64: 8, 128>}]} {
    %c0 = arith.constant 0 : index
    %c0_0 = arith.constant 0 : index
    %c0_1 = arith.constant 0 : index
    %0 = vector.load %arg3[%c0, %c0_0, %c0_1] : memref<3x32x128xbf16, #tpu.memory_space<vmem>>, vector<3x32x128xbf16>
    %1 = arith.extf %0 : vector<3x32x128xbf16> to vector<3x32x128xf32>
    %cst = arith.constant dense<0.000000e+00> : vector<32x128xf32>
    %2 = vector.multi_reduction <add>, %1, %cst [0] : vector<3x32x128xf32> to vector<32x128xf32>
    %c0_2 = arith.constant 0 : index
    %c0_3 = arith.constant 0 : index
    %c0_4 = arith.constant 0 : index
    %3 = vector.load %arg4[%c0_2, %c0_3, %c0_4] : memref<3x1x128xf32, #tpu.memory_space<vmem>>, vector<3x1x128xf32>
    %cst_5 = arith.constant dense<0.000000e+00> : vector<1x128xf32>
    %4 = vector.multi_reduction <add>, %3, %cst_5 [0] : vector<3x1x128xf32> to vector<1x128xf32>
    %c0_6 = arith.constant 0 : index
    %c0_7 = arith.constant 0 : index
    %5 = vector.load %arg2[%c0_6, %c0_7] : memref<8x32xbf16, #tpu.memory_space<vmem>>, vector<8x32xbf16>
    %6 = arith.truncf %2 : vector<32x128xf32> to vector<32x128xbf16>
    %cst_8 = arith.constant dense<0.000000e+00> : vector<8x128xf32>
    %7 = tpu.matmul %5, %6, %cst_8 {dimension_numbers = #tpu.dot_dimension_numbers<[1], [0], [0], [1], [0, 0, 1, 1], [], []>} : vector<8x32xbf16>, vector<32x128xbf16>, vector<8x128xf32> -> vector<8x128xf32>
    %8 = vector.broadcast %4 : vector<1x128xf32> to vector<8x128xf32>
    %9 = arith.addf %7, %8 : vector<8x128xf32>
    %cst_9 = arith.constant 0.333333343 : f32
    %10 = vector.broadcast %cst_9 : f32 to vector<8x128xf32>
    %11 = arith.mulf %9, %10 : vector<8x128xf32>
    %c0_10 = arith.constant 0 : index
    %c0_11 = arith.constant 0 : index
    %12 = vector.load %arg5[%c0_10, %c0_11] : memref<8x128xf32, #tpu.memory_space<vmem>>, vector<8x128xf32>
    tpu.vector_store %arg5[%c0_10, %c0_11], %11 {strides = array<i32>} : memref<8x128xf32, #tpu.memory_space<vmem>>, vector<8x128xf32>,
    return
  }
  func.func @transform_0(%arg0: i32, %arg1: i32) -> (i32, i32) {
    %c0_i32 = arith.constant 0 : i32
    %c0_i32_0 = arith.constant 0 : i32
    return %arg0, %c0_i32 : i32, i32
  }
  func.func @transform_1(%arg0: i32, %arg1: i32) -> (i32, i32, i32) {
    %c0_i32 = arith.constant 0 : i32
    %c0_i32_0 = arith.constant 0 : i32
    %c0_i32_1 = arith.constant 0 : i32
    return %c0_i32, %c0_i32_0, %arg1 : i32, i32, i32
  }
  func.func @transform_2(%arg0: i32, %arg1: i32) -> (i32, i32, i32) {
    %c0_i32 = arith.constant 0 : i32
    %c0_i32_0 = arith.constant 0 : i32
    %c0_i32_1 = arith.constant 0 : i32
    return %c0_i32, %c0_i32_0, %arg1 : i32, i32, i32
  }
  func.func @transform_3(%arg0: i32, %arg1: i32) -> (i32, i32) {
    %c0_i32 = arith.constant 0 : i32
    return %arg0, %arg1 : i32, i32
  }
}

</mosaic_0001>

<llo_original>
// kernel: tpu_custom_call.1
$region0: #{tpu_custom_call.1}
  #allocation0 [shape = 'u32[]', space=smem, size = 0x4, offset = 0x4, fixed_abs, tag = 'smem constant byte address 0x4 - core index']
  #allocation1 [shape = 'u32[144,128]{1,0:T(1,128)}', space=vmem, size = 0x12000, scoped, tag = 'internal scratch']
  %s0 = inlined_call_operand.hbm [shape: bf16[8,32], index: 0, kind: input, shape index: {}]
  %s1 = inlined_call_operand.hbm [shape: bf16[3,32,128], index: 1, kind: input, shape index: {}]
  %s2 = inlined_call_operand.vmem [shape: f32[3,1,128], index: 2, kind: input, shape index: {}]
  %s3 = inlined_call_operand.hbm [shape: f32[8,128], index: 3, kind: output, shape index: {}]
  %s4 = sld [smem:[#allocation0]]
  $region30: #{tpu_custom_call.1} parent=0
    _
  %s6 = ssub.s32 1, %s4
  %s7 = scalar_select 0, %s6, %s4
  $region1: #{tpu_custom_call.1} parent=0
    #allocation2 [shape = 'u8[2048]{0}', space=vmem, size = 0x800, scoped, tag = 'input window, operand 0, single buffered']
    #allocation3 [shape = 's32[1]{0}', space=sflag, size = 0x4, scoped, tag = 'scoped memory for tpu_custom_call.1']
    #allocation4 [shape = 's32[1]{0}', space=sflag, size = 0x4, scoped, tag = 'scoped memory for tpu_custom_call.1']
    #allocation5 [shape = 'u8[24576]{0}', space=vmem, size = 0x6000, scoped, tag = 'input window, operand 1, single buffered']
    #allocation6 [shape = 's32[1]{0}', space=sflag, size = 0x4, scoped, tag = 'scoped memory for tpu_custom_call.1']
    #allocation7 [shape = 'u8[4096]{0}', space=vmem, size = 0x1000, scoped, tag = 'output window, operand 0, single buffered']
    %8 = vsyncpa [#allocation3], 0
    %9 = vsyncpa [#allocation6], 0
    %10 = vsyncpa [#allocation4], 0
    // Predicated region
    $region2: #{tpu_custom_call.1} parent=1 // pred_check
      _
    $region3: #{tpu_custom_call.1} parent=1 // pred_check_branch
      %12 = sbr.rel (0) target = $region5
    $region4: #{tpu_custom_call.1} parent=1 // pred_region
      %s14 = ssub.s32 64, 64
      %15 = vsyncadd [#allocation3], %s14
      %s17 = sshll.u32 [#allocation2], 4
      %s18 = int_to_ptr.vmem [resolvable:$true] %s17
      %20 = dma.hbm_to_vmem [thread:$0]  %s0, 64, %s18, [#allocation3]
    $region5: #{tpu_custom_call.1} parent=1 // pred_fallthru
      _
    // Predicated region
    $region6: #{tpu_custom_call.1} parent=1 // pred_check
      _
    $region7: #{tpu_custom_call.1} parent=1 // pred_check_branch
      %22 = sbr.rel (0) target = $region9
    $region8: #{tpu_custom_call.1} parent=1 // pred_region
      %s24 = ssub.s32 768, 768
      %25 = vsyncadd [#allocation6], %s24
      %s26 = sshll.u32 [#allocation5], 4
      %s27 = int_to_ptr.vmem [resolvable:$true] %s26
      %32 = dma.hbm_to_vmem [thread:$0]  %s1, 768, %s27, [#allocation6], 64, 64, 4
    $region9: #{tpu_custom_call.1} parent=1 // pred_fallthru
      _
    // Predicated region
    $region10: #{tpu_custom_call.1} parent=1 // pred_check
      _
    $region11: #{tpu_custom_call.1} parent=1 // pred_check_branch
      %34 = sbr.rel (0) target = $region13
    $region12: #{tpu_custom_call.1} parent=1 // pred_region
      _
    $region13: #{tpu_custom_call.1} parent=1 // pred_fallthru
      _
    // Predicated region
    $region14: #{tpu_custom_call.1} parent=1 // pred_check
      _
    $region15: #{tpu_custom_call.1} parent=1 // pred_check_branch
      %36 = sbr.rel (0) target = $region17
    $region16: #{tpu_custom_call.1} parent=1 // pred_region
      %37 = dma.done [#allocation3], 64
    $region17: #{tpu_custom_call.1} parent=1 // pred_fallthru
      _
    // Predicated region
    $region18: #{tpu_custom_call.1} parent=1 // pred_check
      _
    $region19: #{tpu_custom_call.1} parent=1 // pred_check_branch
      %39 = sbr.rel (0) target = $region21
    $region20: #{tpu_custom_call.1} parent=1 // pred_region
      %40 = dma.done [#allocation6], 768
    $region21: #{tpu_custom_call.1} parent=1 // pred_fallthru
      _
    %v42 = vld [vmem:[#allocation5] sm:$0xf]
    %v43 = vld [vmem:[#allocation5 + $0x4] sm:$0xf]
    %v44 = vld [vmem:[#allocation5 + $0x8] sm:$0xf]
    %v45 = vld [vmem:[#allocation5 + $0xc] sm:$0xf]
    %v46 = vld [vmem:[#allocation5 + $0x10] sm:$0xf]
    %v47 = vld [vmem:[#allocation5 + $0x14] sm:$0xf]
    %v48 = vld [vmem:[#allocation5 + $0x18] sm:$0xf]
    %v49 = vld [vmem:[#allocation5 + $0x1c] sm:$0xf]
    %v50 = vld [vmem:[#allocation5 + $0x20] sm:$0xf]
    %v51 = vld [vmem:[#allocation5 + $0x24] sm:$0xf]
    %v52 = vld [vmem:[#allocation5 + $0x28] sm:$0xf]
    %v53 = vld [vmem:[#allocation5 + $0x2c] sm:$0xf]
    %v54 = vunpack.c.l.bf16 %v42
    %v55 = vunpack.c.l.bf16 %v43
    %v56 = vunpack.c.l.bf16 %v44
    %v57 = vunpack.c.l.bf16 %v45
    %v58 = vunpack.c.l.bf16 %v46
    %v59 = vunpack.c.l.bf16 %v47
    %v60 = vunpack.c.l.bf16 %v48
    %v61 = vunpack.c.l.bf16 %v49
    %v62 = vunpack.c.l.bf16 %v50
    %v63 = vunpack.c.l.bf16 %v51
    %v64 = vunpack.c.l.bf16 %v52
    %v65 = vunpack.c.l.bf16 %v53
    %v66 = vadd.f32 %v54, %v58
    %v67 = vadd.f32 %v66, %v62
    %v68 = vadd.f32 %v55, %v59
    %v69 = vadd.f32 %v68, %v63
    %v70 = vadd.f32 %v56, %v60
    %v71 = vadd.f32 %v70, %v64
    %v72 = vadd.f32 %v57, %v61
    %v73 = vadd.f32 %v72, %v65
    %v74 = vld [vmem:[%s2] sm:$0x1]
    %v75 = vld [vmem:[%s2 + $0x1] sm:$0x1]
    %v76 = vld [vmem:[%s2 + $0x2] sm:$0x1]
    %vm77 = vcmask 1040384
    %v78 = vsel %vm77, %v74, 0.0
    %v79 = vsel %vm77, %v75, 0.0
    %v80 = vadd.f32 %v78, %v79
    %v81 = vsel %vm77, %v76, 0.0
    %v82 = vadd.f32 %v80, %v81
    %v83 = vld [vmem:[#allocation2] sm:$0xf]
    %v84 = vpack.c.bf16 %v69, %v67
    %v85 = vpack.c.bf16 %v73, %v71
    %v86 = vlaneseq
    %v87 = vshrl.u32 %v86, 7
    %v88 = vsub.s32 0, %v87
    %v89 = vrot.slane %v82, %v88
    %vm90 = vcmask 261120
    %v92 = vsel %vm90, %v83, 0
    %94 = vmatprep.subr.bf16.mxu0 0
    %95 = vmatpush1.bf16.msra.mxu0 %v84
    %96 = vmatprep.subr.bf16.mxu0 0
    %97 = vmatpush1.bf16.msra.mxu0 %v85
    %98 = vmatprep.subr.bf16.mxu0 0
    %99 = vmatpush1.bf16.msra.mxu0 0
    %100 = vmatprep.subr.bf16.mxu0 0
    %101 = vmatpush1.bf16.msra.mxu0 0
    %102 = vmatprep.subr.bf16.mxu0 0
    %103 = vmatpush1.bf16.msra.mxu0 0
    %104 = vmatprep.subr.bf16.mxu0 0
    %105 = vmatpush1.bf16.msra.mxu0 0
    %106 = vmatprep.subr.bf16.mxu0 0
    %107 = vmatpush1.bf16.msra.mxu0 0
    %108 = vmatprep.subr.bf16.mxu0 0
    %109 = vmatpush1.bf16.msra.mxu0 0
    %110 = vmatprep.subr.bf16.mxu0 0
    %111 = vmatpush1.bf16.msra.mxu0 0
    %112 = vmatprep.subr.bf16.mxu0 0
    %113 = vmatpush1.bf16.msra.mxu0 0
    %114 = vmatprep.subr.bf16.mxu0 0
    %115 = vmatpush1.bf16.msra.mxu0 0
    %116 = vmatprep.subr.bf16.mxu0 0
    %117 = vmatpush1.bf16.msra.mxu0 0
    %118 = vmatprep.subr.bf16.mxu0 0
    %119 = vmatpush1.bf16.msra.mxu0 0
    %120 = vmatprep.subr.bf16.mxu0 0
    %121 = vmatpush1.bf16.msra.mxu0 0
    %122 = vmatprep.subr.bf16.mxu0 0
    %123 = vmatpush1.bf16.msra.mxu0 0
    %124 = vmatprep.subr.bf16.mxu0 0
    %125 = vmatpush1.bf16.msra.mxu0 0
    %126 = vmatprep.mubr.bf16.mxu0 0
    %127 = vmatmul.mubr.bf16.gmra.mrb[0].mxu0 %v92
    %v128 = vpop.f32.mrb[0].mxu0
    %v129 = vadd.f32 %v89, %v128
    %v130 = vpop.f32.mrb[0].mxu0
    %v131 = vpop.f32.mrb[0].mxu0
    %v132 = vpop.f32.mrb[0].mxu0
    %133 = vdwg.mxu0
    %v134 = vmul.f32 %v129, 0.33333334
    %135 = vst [vmem:[#allocation7] sm:$0xff] %v134
    // Predicated region
    $region22: #{tpu_custom_call.1} parent=1 // pred_check
      _
    $region23: #{tpu_custom_call.1} parent=1 // pred_check_branch
      %137 = sbr.rel (0) target = $region25
    $region24: #{tpu_custom_call.1} parent=1 // pred_region
      %s139 = ssub.s32 128, 128
      %140 = vsyncadd [#allocation4], %s139
      %s142 = sshll.u32 [#allocation7], 4
      %s143 = int_to_ptr.vmem [resolvable:$true] %s142
      %145 = dma.vmem_to_hbm [thread:$0]  %s143, 128, %s3, [#allocation4]
    $region25: #{tpu_custom_call.1} parent=1 // pred_fallthru
      _
    // Predicated region
    $region26: #{tpu_custom_call.1} parent=1 // pred_check
      _
    $region27: #{tpu_custom_call.1} parent=1 // pred_check_branch
      %147 = sbr.rel (0) target = $region29
    $region28: #{tpu_custom_call.1} parent=1 // pred_region
      %148 = dma.done [#allocation4], 128
    $region29: #{tpu_custom_call.1} parent=1 // pred_fallthru
      _
    %149 = vsyncpa [#allocation3], 1
    %150 = vsyncpa [#allocation6], 1
    %151 = vsyncpa [#allocation4], 1

</llo_original>
